<compile_context>
chip_gen: v6e
topology: v6e:2x2x1
jax: 0.10.0
libtpu: 0.0.40
codegen_flags: <defaults>
</compile_context>

<pallas_src>
import functools

import jax
import jax.numpy as jnp
from jax.experimental import pallas as pl
from jax.experimental.pallas import tpu as pltpu

LANE = 128          # TPU lane width; pad feature (last) dims to multiples of this.
SUBLANE_BF16 = 16   # bf16 packs sublanes in pairs; round node count to 16.


def _round_up(x, m):
    return ((x + m - 1) // m) * m


def _pad2d(x, rows, cols, dtype=None):
    """Zero-pad a 2-D array to (rows, cols), optionally casting."""
    dtype = x.dtype if dtype is None else dtype
    out = jnp.zeros((rows, cols), dtype)
    return out.at[: x.shape[0], : x.shape[1]].set(x.astype(dtype))


# ----------------------------------------------------------------------------
# Pallas kernel: BOTH GCNConv layers fused (bf16 MXU inputs, f32 accumulate)
# ----------------------------------------------------------------------------
def _gcn_fused_kernel(a_ref, x_ref, w1_ref, w2_ref, bias_ref, o_ref,
                      *, h_pad, c_pad, ax_first):
    a = a_ref[...]                                    # bf16 [Np, Np]
    bias = bias_ref[...]                              # f32  [2, max(Hp, Cp)]
    b1 = bias[0:1, :h_pad]
    b2 = bias[1:2, :c_pad]

    # ---- layer 1: h = relu(A @ X @ W1 + b1), contraction order chosen statically
    if ax_first:   # contract over F first (F_pad <= H_pad)
        ax = jnp.dot(a, x_ref[...], preferred_element_type=jnp.float32)
        h = jnp.dot(ax.astype(jnp.bfloat16), w1_ref[...],
                    preferred_element_type=jnp.float32)
    else:          # shrink features before the O(N^2) matmul (F_pad > H_pad)
        xw = jnp.dot(x_ref[...], w1_ref[...], preferred_element_type=jnp.float32)
        h = jnp.dot(a, xw.astype(jnp.bfloat16),
                    preferred_element_type=jnp.float32)
    h = jnp.maximum(h + b1, 0.0)                      # f32 [Np, Hp]

    # F.dropout(p=0.5) in eval mode == identity.

    # ---- layer 2: out = A @ (h @ W2) + b2
    hw = jnp.dot(h.astype(jnp.bfloat16), w2_ref[...],
                 preferred_element_type=jnp.float32)
    out = jnp.dot(a, hw.astype(jnp.bfloat16),
                  preferred_element_type=jnp.float32) + b2

    o_ref[...] = out.astype(o_ref.dtype)              # lane-dense [Np, Cp] store


def _gcn_fused_call(a_p, x_p, w1_p, w2_p, bias_p):
    n_pad = a_p.shape[0]
    f_pad = x_p.shape[1]
    h_pad = w1_p.shape[1]
    c_pad = w2_p.shape[1]
    ax_first = f_pad <= h_pad

    kernel = functools.partial(
        _gcn_fused_kernel, h_pad=h_pad, c_pad=c_pad, ax_first=ax_first)

    # Advisory cost estimate (helps XLA overlap surrounding pad/slice ops).
    k1 = f_pad if ax_first else h_pad
    flops = (2 * n_pad * n_pad * k1              # layer-1 A matmul
             + 2 * n_pad * f_pad * h_pad         # layer-1 W matmul
             + 2 * n_pad * h_pad * c_pad         # layer-2 W matmul
             + 2 * n_pad * n_pad * c_pad)        # layer-2 A matmul
    bytes_accessed = (a_p.size * 2 + x_p.size * 2 + w1_p.size * 2
                      + w2_p.size * 2 + bias_p.size * 4 + n_pad * c_pad * 4)

    vmem = pl.BlockSpec(memory_space=pltpu.MemorySpace.VMEM)
    return pl.pallas_call(
        kernel,
        out_shape=jax.ShapeDtypeStruct((n_pad, c_pad), jnp.float32),
        in_specs=[vmem] * 5,
        out_specs=vmem,
        cost_estimate=pl.CostEstimate(flops=flops, transcendentals=0,
                                      bytes_accessed=bytes_accessed),
        compiler_params=pltpu.CompilerParams(vmem_limit_bytes=32 * 1024 * 1024),
    )(a_p, x_p, w1_p, w2_p, bias_p)


# ----------------------------------------------------------------------------
# Glue: dense normalized adjacency from edge_index (PyG gcn_norm)
# ----------------------------------------------------------------------------
def normalized_adjacency(edge_index, num_nodes):
    src = edge_index[0]
    dst = edge_index[1]
    # message flows src -> dst; duplicate edges sum (like sparse gcn_norm)
    a = jnp.zeros((num_nodes, num_nodes), jnp.float32).at[dst, src].add(1.0)
    # add self-loops only where missing (add_remaining_self_loops)
    diag = jnp.diagonal(a)
    a = a + jnp.diag(jnp.where(diag > 0, 0.0, 1.0))
    deg = a.sum(axis=1)
    d_inv_sqrt = jnp.where(deg > 0, 1.0 / jnp.sqrt(deg), 0.0)
    return d_inv_sqrt[:, None] * a * d_inv_sqrt[None, :]


# ----------------------------------------------------------------------------
# One-time preparation (static graph + static weights): pad + bf16-cast here,
# OUTSIDE the per-call forward.
# ----------------------------------------------------------------------------
def prepare_gcn(edge_index, num_nodes, in_feats, params):
    a_hat = normalized_adjacency(edge_index, num_nodes)

    hidden = params["w1"].shape[1]
    n_classes = params["w2"].shape[1]
    n_pad = max(SUBLANE_BF16, _round_up(num_nodes, SUBLANE_BF16))
    f_pad = _round_up(in_feats, LANE)
    h_pad = _round_up(hidden, LANE)
    c_pad = _round_up(n_classes, LANE)
    bw = max(h_pad, c_pad)

    a_p = _pad2d(a_hat, n_pad, n_pad, jnp.bfloat16)
    w1_p = _pad2d(params["w1"], f_pad, h_pad, jnp.bfloat16)
    w2_p = _pad2d(params["w2"], h_pad, c_pad, jnp.bfloat16)
    bias_p = jnp.zeros((2, bw), jnp.float32)
    bias_p = bias_p.at[0, :hidden].set(params["b1"])
    bias_p = bias_p.at[1, :n_classes].set(params["b2"])
    return a_p, w1_p, w2_p, bias_p


# ----------------------------------------------------------------------------
# Full GCN forward (conv1 -> relu -> [dropout=id, eval] -> conv2), jitted.
# Only the activation X is padded/cast per call.
# ----------------------------------------------------------------------------
@functools.partial(jax.jit, static_argnames=("n_classes",))
def gcn_forward(embeds, a_p, w1_p, w2_p, bias_p, n_classes):
    n = embeds.shape[0]
    n_pad = a_p.shape[0]
    f_pad = w1_p.shape[0]
    x_p = _pad2d(embeds, n_pad, f_pad, jnp.bfloat16)
    out_pad = _gcn_fused_call(a_p, x_p, w1_p, w2_p, bias_p)
    return out_pad[:n, :n_classes]


# ----------------------------------------------------------------------------
# Deterministic parameter init (shapes from the module: in_feats -> 60 -> 15)
# ----------------------------------------------------------------------------
def init_params(key, in_feats, hidden=60, n_classes=15):
    k1, k2, k3, k4 = jax.random.split(key, 4)

    def glorot(k, fan_in, fan_out):
        lim = jnp.sqrt(6.0 / (fan_in + fan_out))
        return jax.random.uniform(k, (fan_in, fan_out), jnp.float32, -lim, lim)

    return {
        "w1": glorot(k1, in_feats, hidden),
        "b1": 0.01 * jax.random.normal(k2, (hidden,), jnp.float32),
        "w2": glorot(k3, hidden, n_classes),
        "b2": 0.01 * jax.random.normal(k4, (n_classes,), jnp.float32),
    }


# ----------------------------------------------------------------------------
# Reference in plain JAX f32 (kernel uses bf16 MXU inputs -> loosened tolerance)
# ----------------------------------------------------------------------------
def gcn_forward_ref(embeds, a_hat, params):
    h = jnp.maximum(a_hat @ (embeds @ params["w1"]) + params["b1"], 0.0)
    return a_hat @ (h @ params["w2"]) + params["b2"]


if __name__ == "__main__":
    key = jax.random.PRNGKey(0)
    k_feat, k_param = jax.random.split(key)

    N_NODES = 16
    IN_FEATS = 32
    N_CLASSES = 15

    # Node embeddings [N, in_feats]
    embeds = jax.random.normal(k_feat, (N_NODES, IN_FEATS), jnp.float32)

    # Deterministic bidirectional ring graph: edge_index [2, 2N]
    nodes = jnp.arange(N_NODES, dtype=jnp.int32)
    nxt = (nodes + 1) % N_NODES
    edge_index = jnp.stack(
        [jnp.concatenate([nodes, nxt]), jnp.concatenate([nxt, nodes])], axis=0
    )

    params = init_params(k_param, IN_FEATS, hidden=60, n_classes=N_CLASSES)

    # Static graph + static weights -> pad/cast ONCE, outside the forward.
    a_p, w1_p, w2_p, bias_p = prepare_gcn(edge_index, N_NODES, IN_FEATS, params)

    out = gcn_forward(embeds, a_p, w1_p, w2_p, bias_p, N_CLASSES)
    out = jax.block_until_ready(out)
    assert out.shape == (N_NODES, N_CLASSES)

    a_hat = normalized_adjacency(edge_index, N_NODES)
    ref = gcn_forward_ref(embeds, a_hat, params)
    assert jnp.allclose(out, ref, atol=5e-2, rtol=5e-2), "mismatch vs JAX ref"

    print("KERNEL_OK")
</pallas_src>

<mosaic_0001>
module attributes {stable_mosaic.version = 11 : i64} {
  func.func @_gcn_fused_kernel(%arg0: memref<16x16xbf16, #tpu.memory_space<vmem>>, %arg1: memref<16x128xbf16, #tpu.memory_space<vmem>>, %arg2: memref<128x128xbf16, #tpu.memory_space<vmem>>, %arg3: memref<128x128xbf16, #tpu.memory_space<vmem>>, %arg4: memref<2x128xf32, #tpu.memory_space<vmem>>, %arg5: memref<16x128xf32, #tpu.memory_space<vmem>>) attributes {dimension_semantics = [], scalar_prefetch = 0 : i64, scratch_operands = 0 : i64, tpu.core_type = #tpu.core_type<tc>} {
    %c0 = arith.constant 0 : index
    %c0_0 = arith.constant 0 : index
    %0 = vector.load %arg0[%c0, %c0_0] : memref<16x16xbf16, #tpu.memory_space<vmem>>, vector<16x16xbf16>
    %c0_1 = arith.constant 0 : index
    %c0_2 = arith.constant 0 : index
    %1 = vector.load %arg4[%c0_1, %c0_2] : memref<2x128xf32, #tpu.memory_space<vmem>>, vector<2x128xf32>
    %2 = vector.extract_strided_slice %1 {offsets = [0, 0], sizes = [1, 128], strides = [1, 1]} : vector<2x128xf32> to vector<1x128xf32>
    %3 = vector.extract_strided_slice %1 {offsets = [1, 0], sizes = [1, 128], strides = [1, 1]} : vector<2x128xf32> to vector<1x128xf32>
    %c0_3 = arith.constant 0 : index
    %c0_4 = arith.constant 0 : index
    %4 = vector.load %arg1[%c0_3, %c0_4] : memref<16x128xbf16, #tpu.memory_space<vmem>>, vector<16x128xbf16>
    %cst = arith.constant dense<0.000000e+00> : vector<16x128xf32>
    %5 = tpu.matmul %0, %4, %cst {dimension_numbers = #tpu.dot_dimension_numbers<[1], [0], [0], [1], [0, 0, 1, 1], [], []>} : vector<16x16xbf16>, vector<16x128xbf16>, vector<16x128xf32> -> vector<16x128xf32>
    %6 = arith.truncf %5 : vector<16x128xf32> to vector<16x128xbf16>
    %c0_5 = arith.constant 0 : index
    %c0_6 = arith.constant 0 : index
    %7 = vector.load %arg2[%c0_5, %c0_6] : memref<128x128xbf16, #tpu.memory_space<vmem>>, vector<128x128xbf16>
    %cst_7 = arith.constant dense<0.000000e+00> : vector<16x128xf32>
    %8 = tpu.matmul %6, %7, %cst_7 {dimension_numbers = #tpu.dot_dimension_numbers<[1], [0], [0], [1], [0, 0, 1, 1], [], []>} : vector<16x128xbf16>, vector<128x128xbf16>, vector<16x128xf32> -> vector<16x128xf32>
    %9 = vector.broadcast %2 : vector<1x128xf32> to vector<16x128xf32>
    %10 = arith.addf %8, %9 : vector<16x128xf32>
    %cst_8 = arith.constant 0.000000e+00 : f32
    %11 = vector.broadcast %cst_8 : f32 to vector<16x128xf32>
    %12 = arith.maximumf %10, %11 : vector<16x128xf32>
    %13 = arith.truncf %12 : vector<16x128xf32> to vector<16x128xbf16>
    %c0_9 = arith.constant 0 : index
    %c0_10 = arith.constant 0 : index
    %14 = vector.load %arg3[%c0_9, %c0_10] : memref<128x128xbf16, #tpu.memory_space<vmem>>, vector<128x128xbf16>
    %cst_11 = arith.constant dense<0.000000e+00> : vector<16x128xf32>
    %15 = tpu.matmul %13, %14, %cst_11 {dimension_numbers = #tpu.dot_dimension_numbers<[1], [0], [0], [1], [0, 0, 1, 1], [], []>} : vector<16x128xbf16>, vector<128x128xbf16>, vector<16x128xf32> -> vector<16x128xf32>
    %16 = arith.truncf %15 : vector<16x128xf32> to vector<16x128xbf16>
    %cst_12 = arith.constant dense<0.000000e+00> : vector<16x128xf32>
    %17 = tpu.matmul %0, %16, %cst_12 {dimension_numbers = #tpu.dot_dimension_numbers<[1], [0], [0], [1], [0, 0, 1, 1], [], []>} : vector<16x16xbf16>, vector<16x128xbf16>, vector<16x128xf32> -> vector<16x128xf32>
    %18 = vector.broadcast %3 : vector<1x128xf32> to vector<16x128xf32>
    %19 = arith.addf %17, %18 : vector<16x128xf32>
    %c0_13 = arith.constant 0 : index
    %c0_14 = arith.constant 0 : index
    %20 = vector.load %arg5[%c0_13, %c0_14] : memref<16x128xf32, #tpu.memory_space<vmem>>, vector<16x128xf32>
    tpu.vector_store %arg5[%c0_13, %c0_14], %19 {strides = array<i32>} : memref<16x128xf32, #tpu.memory_space<vmem>>, vector<16x128xf32>,
    return
  }
}

</mosaic_0001>

<llo_original>
// kernel: gcn_forward.1
$region0: #{gcn_forward.1}
  #allocation0 [shape = 'u32[]', space=smem, size = 0x4, offset = 0x4, fixed_abs, tag = 'smem constant byte address 0x4 - core index']
  #allocation1 [shape = 'u32[144,128]{1,0:T(1,128)}', space=vmem, size = 0x12000, scoped, tag = 'internal scratch']
  %s0 = inlined_call_operand.vmem [shape: bf16[16,16], index: 0, kind: input, shape index: {}]
  %s1 = inlined_call_operand.vmem [shape: bf16[16,128], index: 1, kind: input, shape index: {}]
  %s2 = inlined_call_operand.hbm [shape: bf16[128,128], index: 2, kind: input, shape index: {}]
  %s3 = inlined_call_operand.hbm [shape: bf16[128,128], index: 3, kind: input, shape index: {}]
  %s4 = inlined_call_operand.vmem [shape: f32[2,128], index: 4, kind: input, shape index: {}]
  %s5 = inlined_call_operand.hbm [shape: f32[16,128], index: 5, kind: output, shape index: {}]
  %s6 = sld [smem:[#allocation0]]
  $region38: #{gcn_forward.1} parent=0
    _
  %s8 = ssub.s32 1, %s6
  %s9 = scalar_select 0, %s8, %s6
  $region1: #{gcn_forward.1} parent=0
    #allocation2 [shape = 'u8[32768]{0}', space=vmem, size = 0x8000, scoped, tag = 'input window, operand 2, single buffered']
    #allocation3 [shape = 's32[1]{0}', space=sflag, size = 0x4, scoped, tag = 'scoped memory for gcn_forward.1']
    #allocation4 [shape = 's32[1]{0}', space=sflag, size = 0x4, scoped, tag = 'scoped memory for gcn_forward.1']
    #allocation5 [shape = 'u8[32768]{0}', space=vmem, size = 0x8000, scoped, tag = 'input window, operand 3, single buffered']
    #allocation6 [shape = 's32[1]{0}', space=sflag, size = 0x4, scoped, tag = 'scoped memory for gcn_forward.1']
    #allocation7 [shape = 'u8[8192]{0}', space=vmem, size = 0x2000, scoped, tag = 'output window, operand 0, single buffered']
    %10 = vsyncpa [#allocation3], 0
    %11 = vsyncpa [#allocation6], 0
    %12 = vsyncpa [#allocation4], 0
    // Predicated region
    $region2: #{gcn_forward.1} parent=1 // pred_check
      _
    $region3: #{gcn_forward.1} parent=1 // pred_check_branch
      %14 = sbr.rel (0) target = $region5
    $region4: #{gcn_forward.1} parent=1 // pred_region
      _
    $region5: #{gcn_forward.1} parent=1 // pred_fallthru
      _
    // Predicated region
    $region6: #{gcn_forward.1} parent=1 // pred_check
      _
    $region7: #{gcn_forward.1} parent=1 // pred_check_branch
      %16 = sbr.rel (0) target = $region9
    $region8: #{gcn_forward.1} parent=1 // pred_region
      _
    $region9: #{gcn_forward.1} parent=1 // pred_fallthru
      _
    // Predicated region
    $region10: #{gcn_forward.1} parent=1 // pred_check
      _
    $region11: #{gcn_forward.1} parent=1 // pred_check_branch
      %18 = sbr.rel (0) target = $region13
    $region12: #{gcn_forward.1} parent=1 // pred_region
      %s20 = ssub.s32 1024, 1024
      %21 = vsyncadd [#allocation3], %s20
      %s22 = sshll.u32 [#allocation2], 4
      %s23 = int_to_ptr.vmem [resolvable:$true] %s22
      %28 = dma.hbm_to_vmem [thread:$0]  %s2, 1024, %s23, [#allocation3], 64, 64, 4
    $region13: #{gcn_forward.1} parent=1 // pred_fallthru
      _
    // Predicated region
    $region14: #{gcn_forward.1} parent=1 // pred_check
      _
    $region15: #{gcn_forward.1} parent=1 // pred_check_branch
      %30 = sbr.rel (0) target = $region17
    $region16: #{gcn_forward.1} parent=1 // pred_region
      %s32 = ssub.s32 1024, 1024
      %33 = vsyncadd [#allocation6], %s32
      %s34 = sshll.u32 [#allocation5], 4
      %s35 = int_to_ptr.vmem [resolvable:$true] %s34
      %40 = dma.hbm_to_vmem [thread:$0]  %s3, 1024, %s35, [#allocation6], 64, 64, 4
    $region17: #{gcn_forward.1} parent=1 // pred_fallthru
      _
    // Predicated region
    $region18: #{gcn_forward.1} parent=1 // pred_check
      _
    $region19: #{gcn_forward.1} parent=1 // pred_check_branch
      %42 = sbr.rel (0) target = $region21
    $region20: #{gcn_forward.1} parent=1 // pred_region
      _
    $region21: #{gcn_forward.1} parent=1 // pred_fallthru
      _
    // Predicated region
    $region22: #{gcn_forward.1} parent=1 // pred_check
      _
    $region23: #{gcn_forward.1} parent=1 // pred_check_branch
      %44 = sbr.rel (0) target = $region25
    $region24: #{gcn_forward.1} parent=1 // pred_region
      %45 = dma.done [#allocation3], 1024
    $region25: #{gcn_forward.1} parent=1 // pred_fallthru
      _
    // Predicated region
    $region26: #{gcn_forward.1} parent=1 // pred_check
      _
    $region27: #{gcn_forward.1} parent=1 // pred_check_branch
      %47 = sbr.rel (0) target = $region29
    $region28: #{gcn_forward.1} parent=1 // pred_region
      %48 = dma.done [#allocation6], 1024
    $region29: #{gcn_forward.1} parent=1 // pred_fallthru
      _
    %v50 = vld [vmem:[%s0] sm:$0xf]
    %v51 = vld [vmem:[%s0 + $0x4] sm:$0xf]
    %v52 = vld [vmem:[%s4] sm:$0x3]
    %v53 = vld [vmem:[%s1] sm:$0xf]
    %v54 = vld [vmem:[%s1 + $0x4] sm:$0xf]
    %v57 = vunpack.c.l.b16 %v50
    %v58 = vunpack.c.l.b16 %v51
    %v59 = vpack.c.b16 %v58, %v57
    %v62 = vunpack.c.l.b16 %v53
    %v63 = vunpack.c.l.b16 %v54
    %v64 = vpack.c.b16 %v63, %v62
    %vm66 = vcmask 130048
    %v68 = vsel %vm66, %v59, 0
    %70 = vmatprep.subr.bf16.mxu0 0
    %71 = vmatpush1.bf16.msra.mxu0 0
    %72 = vmatprep.subr.bf16.mxu0 0
    %73 = vmatpush1.bf16.msra.mxu0 0
    %74 = vmatprep.subr.bf16.mxu0 0
    %75 = vmatpush1.bf16.msra.mxu0 0
    %76 = vmatprep.subr.bf16.mxu0 0
    %77 = vmatpush1.bf16.msra.mxu0 0
    %78 = vmatprep.subr.bf16.mxu0 0
    %79 = vmatpush1.bf16.msra.mxu0 0
    %80 = vmatprep.subr.bf16.mxu0 0
    %81 = vmatpush1.bf16.msra.mxu0 0
    %82 = vmatprep.subr.bf16.mxu0 0
    %83 = vmatpush1.bf16.msra.mxu0 0
    %84 = vmatprep.subr.bf16.mxu0 0
    %85 = vmatpush1.bf16.msra.mxu0 %v64
    %86 = vmatprep.subr.bf16.mxu0 0
    %87 = vmatpush2.bf16.msra.mxu0 0
    %88 = vmatprep.subr.bf16.mxu0 0
    %89 = vmatpush2.bf16.msra.mxu0 0
    %90 = vmatprep.subr.bf16.mxu0 0
    %91 = vmatpush2.bf16.msra.mxu0 0
    %92 = vmatprep.subr.bf16.mxu0 0
    %93 = vmatpush2.bf16.msra.mxu0 0
    %94 = vmatprep.subr.bf16.mxu0 0
    %95 = vmatpush2.bf16.msra.mxu0 0
    %96 = vmatprep.subr.bf16.mxu0 0
    %97 = vmatpush2.bf16.msra.mxu0 0
    %98 = vmatprep.subr.bf16.mxu0 0
    %99 = vmatpush2.bf16.msra.mxu0 0
    %100 = vmatprep.subr.bf16.mxu0 0
    %101 = vmatpush2.bf16.msra.mxu0 0
    %102 = vmatprep.mubr.bf16.mxu0 0
    %103 = vmatmul.mubr.bf16.gmra.mxu0 %v68
    %v104 = vpop.f32.mrf.mxu0
    %v105 = vadd.f32 0.0, %v104
    %v106 = vpop.f32.mrf.mxu0
    %v107 = vpop.f32.mrf.mxu0
    %v108 = vadd.f32 0.0, %v107
    %v109 = vpop.f32.mrf.mxu0
    %110 = vdwg.mxu0
    %v111 = vpack.c.bf16 %v108, %v105
    %v112 = vld [vmem:[#allocation2] sm:$0xf]
    %v113 = vld [vmem:[#allocation2 + $0x4] sm:$0xf]
    %v114 = vld [vmem:[#allocation2 + $0x8] sm:$0xf]
    %v115 = vld [vmem:[#allocation2 + $0xc] sm:$0xf]
    %v116 = vld [vmem:[#allocation2 + $0x10] sm:$0xf]
    %v117 = vld [vmem:[#allocation2 + $0x14] sm:$0xf]
    %v118 = vld [vmem:[#allocation2 + $0x18] sm:$0xf]
    %v119 = vld [vmem:[#allocation2 + $0x1c] sm:$0xf]
    %v120 = vld [vmem:[#allocation2 + $0x20] sm:$0xf]
    %v121 = vld [vmem:[#allocation2 + $0x24] sm:$0xf]
    %v122 = vld [vmem:[#allocation2 + $0x28] sm:$0xf]
    %v123 = vld [vmem:[#allocation2 + $0x2c] sm:$0xf]
    %v124 = vld [vmem:[#allocation2 + $0x30] sm:$0xf]
    %v125 = vld [vmem:[#allocation2 + $0x34] sm:$0xf]
    %v126 = vld [vmem:[#allocation2 + $0x38] sm:$0xf]
    %v127 = vld [vmem:[#allocation2 + $0x3c] sm:$0xf]
    %v128 = vlaneseq
    %v129 = vshrl.u32 %v128, 7
    %v130 = vsub.s32 0, %v129
    %v131 = vrot.slane %v52, %v130
    %v148 = vunpack.c.l.b16 %v112
    %v149 = vunpack.c.l.b16 %v113
    %v150 = vunpack.c.l.b16 %v114
    %v151 = vunpack.c.l.b16 %v115
    %v152 = vunpack.c.l.b16 %v116
    %v153 = vunpack.c.l.b16 %v117
    %v154 = vunpack.c.l.b16 %v118
    %v155 = vunpack.c.l.b16 %v119
    %v156 = vunpack.c.l.b16 %v120
    %v157 = vunpack.c.l.b16 %v121
    %v158 = vunpack.c.l.b16 %v122
    %v159 = vunpack.c.l.b16 %v123
    %v160 = vunpack.c.l.b16 %v124
    %v161 = vunpack.c.l.b16 %v125
    %v162 = vunpack.c.l.b16 %v126
    %v163 = vunpack.c.l.b16 %v127
    %v164 = vpack.c.b16 %v149, %v148
    %v165 = vpack.c.b16 %v151, %v150
    %v166 = vpack.c.b16 %v153, %v152
    %v167 = vpack.c.b16 %v155, %v154
    %v168 = vpack.c.b16 %v157, %v156
    %v169 = vpack.c.b16 %v159, %v158
    %v170 = vpack.c.b16 %v161, %v160
    %v171 = vpack.c.b16 %v163, %v162
    %180 = vmatprep.subr.bf16.mxu0 0
    %181 = vmatpush1.bf16.msra.mxu0 %v171
    %182 = vmatprep.subr.bf16.mxu0 0
    %183 = vmatpush1.bf16.msra.mxu0 %v170
    %184 = vmatprep.subr.bf16.mxu0 0
    %185 = vmatpush1.bf16.msra.mxu0 %v169
    %186 = vmatprep.subr.bf16.mxu0 0
    %187 = vmatpush1.bf16.msra.mxu0 %v168
    %188 = vmatprep.subr.bf16.mxu0 0
    %189 = vmatpush1.bf16.msra.mxu0 %v167
    %190 = vmatprep.subr.bf16.mxu0 0
    %191 = vmatpush1.bf16.msra.mxu0 %v166
    %192 = vmatprep.subr.bf16.mxu0 0
    %193 = vmatpush1.bf16.msra.mxu0 %v165
    %194 = vmatprep.subr.bf16.mxu0 0
    %195 = vmatpush1.bf16.msra.mxu0 %v164
    %196 = vmatprep.subr.bf16.mxu0 0
    %197 = vmatpush2.bf16.msra.mxu0 0
    %198 = vmatprep.subr.bf16.mxu0 0
    %199 = vmatpush2.bf16.msra.mxu0 0
    %200 = vmatprep.subr.bf16.mxu0 0
    %201 = vmatpush2.bf16.msra.mxu0 0
    %202 = vmatprep.subr.bf16.mxu0 0
    %203 = vmatpush2.bf16.msra.mxu0 0
    %204 = vmatprep.subr.bf16.mxu0 0
    %205 = vmatpush2.bf16.msra.mxu0 0
    %206 = vmatprep.subr.bf16.mxu0 0
    %207 = vmatpush2.bf16.msra.mxu0 0
    %208 = vmatprep.subr.bf16.mxu0 0
    %209 = vmatpush2.bf16.msra.mxu0 0
    %210 = vmatprep.subr.bf16.mxu0 0
    %211 = vmatpush2.bf16.msra.mxu0 0
    %212 = vmatprep.mubr.bf16.mxu0 0
    %213 = vmatmul.mubr.bf16.gmra.mxu0 %v111
    %v214 = vpop.f32.mrf.mxu0
    %v215 = vadd.f32 %v131, %v214
    %v216 = vpop.f32.mrf.mxu0
    %v217 = vpop.f32.mrf.mxu0
    %v218 = vadd.f32 %v131, %v217
    %v219 = vpop.f32.mrf.mxu0
    %220 = vdwg.mxu0
    %v221 = vmax.f32 %v215, 0.0
    %v222 = vmax.f32 %v218, 0.0
    %v223 = vpack.c.bf16 %v222, %v221
    %v224 = vld [vmem:[#allocation5] sm:$0xf]
    %v225 = vld [vmem:[#allocation5 + $0x4] sm:$0xf]
    %v226 = vld [vmem:[#allocation5 + $0x8] sm:$0xf]
    %v227 = vld [vmem:[#allocation5 + $0xc] sm:$0xf]
    %v228 = vld [vmem:[#allocation5 + $0x10] sm:$0xf]
    %v229 = vld [vmem:[#allocation5 + $0x14] sm:$0xf]
    %v230 = vld [vmem:[#allocation5 + $0x18] sm:$0xf]
    %v231 = vld [vmem:[#allocation5 + $0x1c] sm:$0xf]
    %v232 = vld [vmem:[#allocation5 + $0x20] sm:$0xf]
    %v233 = vld [vmem:[#allocation5 + $0x24] sm:$0xf]
    %v234 = vld [vmem:[#allocation5 + $0x28] sm:$0xf]
    %v235 = vld [vmem:[#allocation5 + $0x2c] sm:$0xf]
    %v236 = vld [vmem:[#allocation5 + $0x30] sm:$0xf]
    %v237 = vld [vmem:[#allocation5 + $0x34] sm:$0xf]
    %v238 = vld [vmem:[#allocation5 + $0x38] sm:$0xf]
    %v239 = vld [vmem:[#allocation5 + $0x3c] sm:$0xf]
    %v256 = vunpack.c.l.b16 %v224
    %v257 = vunpack.c.l.b16 %v225
    %v258 = vunpack.c.l.b16 %v226
    %v259 = vunpack.c.l.b16 %v227
    %v260 = vunpack.c.l.b16 %v228
    %v261 = vunpack.c.l.b16 %v229
    %v262 = vunpack.c.l.b16 %v230
    %v263 = vunpack.c.l.b16 %v231
    %v264 = vunpack.c.l.b16 %v232
    %v265 = vunpack.c.l.b16 %v233
    %v266 = vunpack.c.l.b16 %v234
    %v267 = vunpack.c.l.b16 %v235
    %v268 = vunpack.c.l.b16 %v236
    %v269 = vunpack.c.l.b16 %v237
    %v270 = vunpack.c.l.b16 %v238
    %v271 = vunpack.c.l.b16 %v239
    %v272 = vpack.c.b16 %v257, %v256
    %v273 = vpack.c.b16 %v259, %v258
    %v274 = vpack.c.b16 %v261, %v260
    %v275 = vpack.c.b16 %v263, %v262
    %v276 = vpack.c.b16 %v265, %v264
    %v277 = vpack.c.b16 %v267, %v266
    %v278 = vpack.c.b16 %v269, %v268
    %v279 = vpack.c.b16 %v271, %v270
    %288 = vmatprep.subr.bf16.mxu0 0
    %289 = vmatpush1.bf16.msra.mxu0 %v279
    %290 = vmatprep.subr.bf16.mxu0 0
    %291 = vmatpush1.bf16.msra.mxu0 %v278
    %292 = vmatprep.subr.bf16.mxu0 0
    %293 = vmatpush1.bf16.msra.mxu0 %v277
    %294 = vmatprep.subr.bf16.mxu0 0
    %295 = vmatpush1.bf16.msra.mxu0 %v276
    %296 = vmatprep.subr.bf16.mxu0 0
    %297 = vmatpush1.bf16.msra.mxu0 %v275
    %298 = vmatprep.subr.bf16.mxu0 0
    %299 = vmatpush1.bf16.msra.mxu0 %v274
    %300 = vmatprep.subr.bf16.mxu0 0
    %301 = vmatpush1.bf16.msra.mxu0 %v273
    %302 = vmatprep.subr.bf16.mxu0 0
    %303 = vmatpush1.bf16.msra.mxu0 %v272
    %304 = vmatprep.subr.bf16.mxu0 0
    %305 = vmatpush2.bf16.msra.mxu0 0
    %306 = vmatprep.subr.bf16.mxu0 0
    %307 = vmatpush2.bf16.msra.mxu0 0
    %308 = vmatprep.subr.bf16.mxu0 0
    %309 = vmatpush2.bf16.msra.mxu0 0
    %310 = vmatprep.subr.bf16.mxu0 0
    %311 = vmatpush2.bf16.msra.mxu0 0
    %312 = vmatprep.subr.bf16.mxu0 0
    %313 = vmatpush2.bf16.msra.mxu0 0
    %314 = vmatprep.subr.bf16.mxu0 0
    %315 = vmatpush2.bf16.msra.mxu0 0
    %316 = vmatprep.subr.bf16.mxu0 0
    %317 = vmatpush2.bf16.msra.mxu0 0
    %318 = vmatprep.subr.bf16.mxu0 0
    %319 = vmatpush2.bf16.msra.mxu0 0
    %320 = vmatprep.mubr.bf16.mxu0 0
    %321 = vmatmul.mubr.bf16.gmra.mxu0 %v223
    %v322 = vpop.f32.mrf.mxu0
    %v323 = vadd.f32 0.0, %v322
    %v324 = vpop.f32.mrf.mxu0
    %v325 = vpop.f32.mrf.mxu0
    %v326 = vadd.f32 0.0, %v325
    %v327 = vpop.f32.mrf.mxu0
    %328 = vdwg.mxu0
    %v329 = vpack.c.bf16 %v326, %v323
    %v330 = vlaneseq
    %v331 = vshrl.u32 %v330, 7
    %v332 = vsub.s32 1, %v331
    %v333 = vrot.slane %v52, %v332
    %334 = vmatprep.subr.bf16.mxu0 0
    %335 = vmatpush1.bf16.msra.mxu0 0
    %336 = vmatprep.subr.bf16.mxu0 0
    %337 = vmatpush1.bf16.msra.mxu0 0
    %338 = vmatprep.subr.bf16.mxu0 0
    %339 = vmatpush1.bf16.msra.mxu0 0
    %340 = vmatprep.subr.bf16.mxu0 0
    %341 = vmatpush1.bf16.msra.mxu0 0
    %342 = vmatprep.subr.bf16.mxu0 0
    %343 = vmatpush1.bf16.msra.mxu0 0
    %344 = vmatprep.subr.bf16.mxu0 0
    %345 = vmatpush1.bf16.msra.mxu0 0
    %346 = vmatprep.subr.bf16.mxu0 0
    %347 = vmatpush1.bf16.msra.mxu0 0
    %348 = vmatprep.subr.bf16.mxu0 0
    %349 = vmatpush1.bf16.msra.mxu0 %v329
    %350 = vmatprep.subr.bf16.mxu0 0
    %351 = vmatpush2.bf16.msra.mxu0 0
    %352 = vmatprep.subr.bf16.mxu0 0
    %353 = vmatpush2.bf16.msra.mxu0 0
    %354 = vmatprep.subr.bf16.mxu0 0
    %355 = vmatpush2.bf16.msra.mxu0 0
    %356 = vmatprep.subr.bf16.mxu0 0
    %357 = vmatpush2.bf16.msra.mxu0 0
    %358 = vmatprep.subr.bf16.mxu0 0
    %359 = vmatpush2.bf16.msra.mxu0 0
    %360 = vmatprep.subr.bf16.mxu0 0
    %361 = vmatpush2.bf16.msra.mxu0 0
    %362 = vmatprep.subr.bf16.mxu0 0
    %363 = vmatpush2.bf16.msra.mxu0 0
    %364 = vmatprep.subr.bf16.mxu0 0
    %365 = vmatpush2.bf16.msra.mxu0 0
    %366 = vmatprep.mubr.bf16.mxu0 0
    %367 = vmatmul.mubr.bf16.gmra.mxu0 %v68
    %v368 = vpop.f32.mrf.mxu0
    %v369 = vadd.f32 %v333, %v368
    %v370 = vpop.f32.mrf.mxu0
    %v371 = vpop.f32.mrf.mxu0
    %v372 = vadd.f32 %v333, %v371
    %v373 = vpop.f32.mrf.mxu0
    %374 = vdwg.mxu0
    %375 = vst [vmem:[#allocation7] sm:$0xff] %v369
    %376 = vst [vmem:[#allocation7 + $0x8] sm:$0xff] %v372
    // Predicated region
    $region30: #{gcn_forward.1} parent=1 // pred_check
      _
    $region31: #{gcn_forward.1} parent=1 // pred_check_branch
      %378 = sbr.rel (0) target = $region33
    $region32: #{gcn_forward.1} parent=1 // pred_region
      %s380 = ssub.s32 256, 256
      %381 = vsyncadd [#allocation4], %s380
      %s382 = sshll.u32 [#allocation7], 4
      %s383 = int_to_ptr.vmem [resolvable:$true] %s382
      %388 = dma.vmem_to_hbm [thread:$0]  %s383, 256, %s5, [#allocation4], 128, 128, 8
    $region33: #{gcn_forward.1} parent=1 // pred_fallthru
      _
    // Predicated region
    $region34: #{gcn_forward.1} parent=1 // pred_check
      _
    $region35: #{gcn_forward.1} parent=1 // pred_check_branch
      %390 = sbr.rel (0) target = $region37
    $region36: #{gcn_forward.1} parent=1 // pred_region
      %391 = dma.done [#allocation4], 256
    $region37: #{gcn_forward.1} parent=1 // pred_fallthru
      _
    %392 = vsyncpa [#allocation3], 1
    %393 = vsyncpa [#allocation6], 1
    %394 = vsyncpa [#allocation4], 1

</llo_original>
